<compile_context>
chip_gen: v7x
topology: tpu7x:2x2x1
jax: 0.10.0
libtpu: 0.0.40
codegen_flags: <defaults>
</compile_context>

<pallas_src>
import math
import numpy as np
import jax
import jax.numpy as jnp
from jax.experimental import pallas as pl
from jax.experimental.pallas import tpu as pltpu

BN_EPS = 1e-5


def _round_up(a, b):
    return (a + b - 1) // b * b


def bn_affine(gamma, beta, mean, var, eps=BN_EPS):
    s = gamma / jnp.sqrt(var + eps)
    return s, beta - mean * s


# ----------------------------- fused matmul + bias + BN(affine) -----------------------------

def _matmul_bias_affine_kernel(x_ref, w_ref, b_ref, s_ref, t_ref, o_ref):
    acc = jnp.dot(x_ref[...], w_ref[...], preferred_element_type=jnp.float32)
    o_ref[...] = (acc + b_ref[...]) * s_ref[...] + t_ref[...]


def matmul_bias_affine(x, w, b, s, t, *, tm=512):
    """out = (x @ w + b) * s + t  ;  x:(R,K), w:(K,D). bf16 MXU operands, f32 epilogue."""
    R, K = x.shape
    D = w.shape[1]
    tm = min(tm, _round_up(R, 8))
    Rp = _round_up(R, tm)
    xb = x.astype(jnp.bfloat16)
    if Rp != R:
        xb = jnp.pad(xb, ((0, Rp - R), (0, 0)))
    out = pl.pallas_call(
        _matmul_bias_affine_kernel,
        out_shape=jax.ShapeDtypeStruct((Rp, D), jnp.float32),
        grid=(Rp // tm,),
        in_specs=[
            pl.BlockSpec((tm, K), lambda i: (i, 0)),
            pl.BlockSpec((K, D), lambda i: (0, 0)),
            pl.BlockSpec((1, D), lambda i: (0, 0)),
            pl.BlockSpec((1, D), lambda i: (0, 0)),
            pl.BlockSpec((1, D), lambda i: (0, 0)),
        ],
        out_specs=pl.BlockSpec((tm, D), lambda i: (i, 0)),
        compiler_params=pltpu.CompilerParams(
            dimension_semantics=("parallel",),
            vmem_limit_bytes=64 * 1024 * 1024),
    )(xb, w.astype(jnp.bfloat16),
      b.reshape(1, D).astype(jnp.float32),
      s.reshape(1, D).astype(jnp.float32),
      t.reshape(1, D).astype(jnp.float32))
    return out[:R] if Rp != R else out


# ----------------------------- decoupled GCN aggregation -----------------------------

def _gcn_agg_kernel(xk_ref, a_ref, r_ref, o_ref):
    # xk_ref: (3, Cb, N*T, V) bf16 ; a_ref: (3, Cb, V, V) bf16 ; r_ref/o_ref: (Cb, N*T, V) f32
    cb = o_ref.shape[0]
    nsub = a_ref.shape[0]
    for c in range(cb):                                # small static channel block (<=16)
        acc = jnp.dot(xk_ref[0, c], a_ref[0, c], preferred_element_type=jnp.float32)
        for k in range(1, nsub):
            acc = acc + jnp.dot(xk_ref[k, c], a_ref[k, c],
                                preferred_element_type=jnp.float32)
        # BN scale folded into a_ref, BN shift folded into r_ref (residual).
        o_ref[c] = jnp.maximum(acc + r_ref[c], 0.0)


def gcn_aggregate(xk, a_scaled, res):
    """xk: (3, C, N*T, V); a_scaled: (3, C, V, V); res: (C, N*T, V). -> relu(agg + res), (C, N*T, V)."""
    S, C, NT, V = xk.shape
    cb = next(d for d in (16, 8, 4, 2, 1) if C % d == 0)
    return pl.pallas_call(
        _gcn_agg_kernel,
        out_shape=jax.ShapeDtypeStruct((C, NT, V), jnp.float32),
        grid=(C // cb,),
        in_specs=[
            pl.BlockSpec((S, cb, NT, V), lambda i: (0, i, 0, 0)),
            pl.BlockSpec((S, cb, V, V), lambda i: (0, i, 0, 0)),
            pl.BlockSpec((cb, NT, V), lambda i: (i, 0, 0)),
        ],
        out_specs=pl.BlockSpec((cb, NT, V), lambda i: (i, 0, 0)),
        compiler_params=pltpu.CompilerParams(dimension_semantics=("parallel",)),
    )(xk.astype(jnp.bfloat16), a_scaled.astype(jnp.bfloat16), res)


# ----------------------------- attention (spatial / temporal / channel) -----------------------------

def _make_attention_kernel(T, V, C, ker_jpt):
    pad_j = (ker_jpt - 1) // 2

    def kernel(y_ref, wsa_ref, bsa_ref, wta_ref, bta_ref,
               w1_ref, b1_ref, w2_ref, b2_ref, o_ref):
        f32 = jnp.float32
        y = y_ref[0]                                           # (T, V, C) channels-last

        # ---- spatial attention: 1-D conv over joints V (kernel ker_jpt) as shifted-tap matmuls
        se = jnp.mean(y, axis=0)                               # (V, C)
        if pad_j > 0:
            z = jnp.zeros((pad_j, C), f32)
            se = jnp.concatenate([z, se, z], axis=0)           # (V + ker_jpt - 1, C)
        acc_s = jnp.zeros((V, 1), f32) + bsa_ref[...]
        for k in range(ker_jpt):
            acc_s = acc_s + jnp.dot(se[k:k + V, :], wsa_ref[k],
                                    preferred_element_type=f32)
        y = y * (1.0 + jax.nn.sigmoid(acc_s)[None, :, :])      # fused y*s + y

        # ---- temporal attention: 1-D conv over time T (kernel 9)
        st = jnp.mean(y, axis=1)                               # (T, C)
        zt = jnp.zeros((4, C), f32)
        st = jnp.concatenate([zt, st, zt], axis=0)             # (T + 8, C)
        acc_t = jnp.zeros((T, 1), f32) + bta_ref[...]
        for k in range(9):
            acc_t = acc_t + jnp.dot(st[k:k + T, :], wta_ref[k],
                                    preferred_element_type=f32)
        y = y * (1.0 + jax.nn.sigmoid(acc_t)[:, :, None])

        # ---- channel attention: squeeze-excite MLP as row-vector matmuls
        sc = jnp.mean(jnp.mean(y, axis=0), axis=0, keepdims=True)          # (1, C)
        h = jnp.maximum(jnp.dot(sc, w1_ref[...], preferred_element_type=f32) + b1_ref[...], 0.0)
        s3 = jax.nn.sigmoid(jnp.dot(h, w2_ref[...], preferred_element_type=f32) + b2_ref[...])
        y = y * (1.0 + s3[None, :, :])

        o_ref[0] = y

    return kernel


def attention_apply(y_nl, sa_w, sa_b, ta_w, ta_b, fc1_w, fc1_b, fc2_w, fc2_b):
    N, T, V, C = y_nl.shape
    ker_jpt = sa_w.shape[1]
    C2 = fc1_w.shape[0]
    wsa = jnp.transpose(sa_w, (1, 0)).reshape(ker_jpt, C, 1)   # [k, c, 0] = w[c, k]
    wta = jnp.transpose(ta_w, (1, 0)).reshape(9, C, 1)

    def fullspec(shape):
        nd = len(shape)
        return pl.BlockSpec(shape, lambda n, nd=nd: (0,) * nd)

    return pl.pallas_call(
        _make_attention_kernel(T, V, C, ker_jpt),
        out_shape=jax.ShapeDtypeStruct((N, T, V, C), jnp.float32),
        grid=(N,),
        in_specs=[
            pl.BlockSpec((1, T, V, C), lambda n: (n, 0, 0, 0)),
            fullspec((ker_jpt, C, 1)), fullspec((1, 1)),
            fullspec((9, C, 1)), fullspec((1, 1)),
            fullspec((C, C2)), fullspec((1, C2)),
            fullspec((C2, C)), fullspec((1, C)),
        ],
        out_specs=pl.BlockSpec((1, T, V, C), lambda n: (n, 0, 0, 0)),
        compiler_params=pltpu.CompilerParams(dimension_semantics=("parallel",)),
    )(y_nl, wsa, sa_b.reshape(1, 1), wta, ta_b.reshape(1, 1),
      jnp.transpose(fc1_w), fc1_b.reshape(1, C2),
      jnp.transpose(fc2_w), fc2_b.reshape(1, C))


# ----------------------------- 9x1 temporal conv + BN + residual + ReLU -----------------------------

def temporal_conv_bn_res_relu(y_nl, tcn_w, bias, scale, shift, res_flat, *, cout_block=128):
    """y_nl: (N, T, V, C) f32; tcn_w: (Cout, C, 9); res_flat: (N*T*V, Cout) f32.
    Returns relu((conv9x1(y) + bias)*scale + shift + res) as (N*T*V, Cout) f32.
    Conv = 9 shifted (T*V, C) @ (C, Cout_blk) bf16 matmuls accumulated in-VMEM (no im2col)."""
    N, T, V, C = y_nl.shape
    Cout = tcn_w.shape[0]
    w9 = jnp.transpose(tcn_w, (2, 1, 0)).astype(jnp.bfloat16)            # (9, C, Cout)
    x_flat = jnp.pad(y_nl, ((0, 0), (4, 4), (0, 0), (0, 0))).astype(jnp.bfloat16)
    x_flat = x_flat.reshape(N * (T + 8) * V, C)
    cb = Cout if Cout <= cout_block else cout_block
    assert Cout % cb == 0
    TV, TPV = T * V, (T + 8) * V

    def kernel(x_ref, w_ref, b_ref, s_ref, t_ref, r_ref, o_ref):
        acc = jnp.dot(x_ref[pl.ds(0, TV), :], w_ref[0], preferred_element_type=jnp.float32)
        for k in range(1, 9):
            acc = acc + jnp.dot(x_ref[pl.ds(k * V, TV), :], w_ref[k],
                                preferred_element_type=jnp.float32)
        o_ref[...] = jnp.maximum(
            (acc + b_ref[...]) * s_ref[...] + t_ref[...] + r_ref[...], 0.0)

    return pl.pallas_call(
        kernel,
        out_shape=jax.ShapeDtypeStruct((N * TV, Cout), jnp.float32),
        grid=(N, Cout // cb),
        in_specs=[
            pl.BlockSpec((TPV, C), lambda n, j: (n, 0)),
            pl.BlockSpec((9, C, cb), lambda n, j: (0, 0, j)),
            pl.BlockSpec((1, cb), lambda n, j: (0, j)),
            pl.BlockSpec((1, cb), lambda n, j: (0, j)),
            pl.BlockSpec((1, cb), lambda n, j: (0, j)),
            pl.BlockSpec((TV, cb), lambda n, j: (n, j)),
        ],
        out_specs=pl.BlockSpec((TV, cb), lambda n, j: (n, j)),
        compiler_params=pltpu.CompilerParams(
            dimension_semantics=("parallel", "parallel"),
            vmem_limit_bytes=64 * 1024 * 1024),
    )(x_flat, w9, bias.reshape(1, Cout), scale.reshape(1, Cout),
      shift.reshape(1, Cout), res_flat)


# ----------------------------- parameters -----------------------------

def init_params(key, in_channels, out_channels, A, groups, num_point):
    V = num_point
    Cin, Cout = in_channels, out_channels
    num_subset = 3
    ks = jax.random.split(key, 8)
    f32 = jnp.float32

    def bn_params(c, scale=1.0):
        return (jnp.full((c,), scale, f32), jnp.zeros((c,), f32),
                jnp.zeros((c,), f32), jnp.ones((c,), f32))

    p = {}
    # --- unit_gcn ---
    p["DecoupleA"] = jnp.tile(A.astype(f32).reshape(3, 1, V, V), (1, groups, 1, 1))
    p["Linear_weight"] = (math.sqrt(0.5 / (Cout * num_subset))
                          * jax.random.normal(ks[0], (Cin, Cout * num_subset), f32))
    p["Linear_bias"] = jnp.full((Cout * num_subset,), 1e-6, f32)
    p["bn0_gamma"], p["bn0_beta"], p["bn0_mean"], p["bn0_var"] = bn_params(Cout * num_subset, 1.0)
    p["bn_gcn_gamma"], p["bn_gcn_beta"], p["bn_gcn_mean"], p["bn_gcn_var"] = bn_params(Cout, 1e-6)
    p["down_w"] = math.sqrt(2.0 / Cout) * jax.random.normal(ks[1], (Cin, Cout), f32)
    p["down_b"] = jnp.zeros((Cout,), f32)
    p["down_bn_gamma"], p["down_bn_beta"], p["down_bn_mean"], p["down_bn_var"] = bn_params(Cout, 1.0)
    # --- attention ---
    ker_jpt = V - 1 if V % 2 == 0 else V
    p["sa_w"] = (math.sqrt(2.0 / ((Cout + 1) * ker_jpt))
                 * jax.random.normal(ks[2], (Cout, ker_jpt), f32))
    p["sa_b"] = jnp.zeros((1,), f32)
    p["ta_w"] = jnp.zeros((Cout, 9), f32)            # conv_ta init: constant 0
    p["ta_b"] = jnp.zeros((1,), f32)
    p["fc1_w"] = math.sqrt(2.0 / Cout) * jax.random.normal(ks[3], (Cout // 2, Cout), f32)
    p["fc1_b"] = jnp.zeros((Cout // 2,), f32)
    p["fc2_w"] = jnp.zeros((Cout, Cout // 2), f32)   # fc2c init: constant 0
    p["fc2_b"] = jnp.zeros((Cout,), f32)
    # --- unit_tcn (9x1 conv) ---
    p["tcn_w"] = math.sqrt(2.0 / (Cout * 9)) * jax.random.normal(ks[4], (Cout, Cout, 9), f32)
    p["tcn_b"] = jnp.zeros((Cout,), f32)
    p["tcn_bn_gamma"], p["tcn_bn_beta"], p["tcn_bn_mean"], p["tcn_bn_var"] = bn_params(Cout, 1.0)
    # --- residual unit_tcn_skip (1x1 conv) ---
    p["skip_w"] = math.sqrt(2.0 / Cout) * jax.random.normal(ks[5], (Cin, Cout), f32)
    p["skip_b"] = jnp.zeros((Cout,), f32)
    p["skip_bn_gamma"], p["skip_bn_beta"], p["skip_bn_mean"], p["skip_bn_var"] = bn_params(Cout, 1.0)
    return p


# ----------------------------- forward (Pallas path) -----------------------------

def tcn_gcn_unit_forward(x, params, *, groups, stride=1, residual=True,
                         attention=True, keep_prob=1.0):
    # TODO(synk): DropBlock_Ske / DropBlockT_1d are stochastic drop regularizers; at
    # keep_prob=1.0 (inference) they are identities, which is what is implemented here.
    assert stride == 1, "only stride=1 is implemented"
    N, Cin, T, V = x.shape
    Cout = params["tcn_w"].shape[0]
    num_subset = 3
    R = N * T * V

    x_cl = jnp.transpose(x, (0, 2, 3, 1)).reshape(R, Cin)           # channels-last slab

    # ---------------- unit_gcn ----------------
    learn_A = jnp.tile(params["DecoupleA"], (1, Cout // groups, 1, 1))       # (3, Cout, V, V)
    Dcol = jnp.sum(learn_A, axis=2)                                          # column sums
    normA = learn_A / (Dcol[:, :, None, :] + 0.001)

    s0, t0 = bn_affine(params["bn0_gamma"], params["bn0_beta"],
                       params["bn0_mean"], params["bn0_var"])
    x1 = matmul_bias_affine(x_cl, params["Linear_weight"], params["Linear_bias"], s0, t0)
    xk = jnp.transpose(x1.reshape(N, T, V, num_subset, Cout),
                       (3, 4, 0, 1, 2)).reshape(num_subset, Cout, N * T, V)

    sg, tg = bn_affine(params["bn_gcn_gamma"], params["bn_gcn_beta"],
                       params["bn_gcn_mean"], params["bn_gcn_var"])
    a_scaled = normA * sg[None, :, None, None]                               # BN scale folded

    if Cin != Cout:
        sd, td = bn_affine(params["down_bn_gamma"], params["down_bn_beta"],
                           params["down_bn_mean"], params["down_bn_var"])
        # bn_gcn shift (tg) folded into the down-branch epilogue shift
        down_flat = matmul_bias_affine(x_cl, params["down_w"], params["down_b"], sd, td + tg)
        res_cf = jnp.transpose(down_flat.reshape(N, T, V, Cout),
                               (3, 0, 1, 2)).reshape(Cout, N * T, V)
    else:
        res_cf = (jnp.transpose(x, (1, 0, 2, 3)).reshape(Cout, N * T, V)
                  + tg[:, None, None])

    y_cf = gcn_aggregate(xk, a_scaled, res_cf)                               # (Cout, N*T, V), ReLU fused
    y_nl = jnp.transpose(y_cf.reshape(Cout, N, T, V), (1, 2, 3, 0))          # (N, T, V, Cout)

    # ---------------- attention ----------------
    if attention:
        y_nl = attention_apply(y_nl, params["sa_w"], params["sa_b"],
                               params["ta_w"], params["ta_b"],
                               params["fc1_w"], params["fc1_b"],
                               params["fc2_w"], params["fc2_b"])

    # ---------------- residual skip ----------------
    if not residual:
        skip_flat = jnp.zeros((R, Cout), jnp.float32)
    elif Cin == Cout and stride == 1:
        skip_flat = x_cl
    else:
        ss, ts = bn_affine(params["skip_bn_gamma"], params["skip_bn_beta"],
                           params["skip_bn_mean"], params["skip_bn_var"])
        skip_flat = matmul_bias_affine(x_cl, params["skip_w"], params["skip_b"], ss, ts)

    # ---------------- unit_tcn (+ residual + relu, fused) ----------------
    st_, tt_ = bn_affine(params["tcn_bn_gamma"], params["tcn_bn_beta"],
                         params["tcn_bn_mean"], params["tcn_bn_var"])
    out_flat = temporal_conv_bn_res_relu(y_nl, params["tcn_w"], params["tcn_b"],
                                         st_, tt_, skip_flat)
    return jnp.transpose(out_flat.reshape(N, T, V, Cout), (0, 3, 1, 2))


# ----------------------------- pure-JAX reference -----------------------------

def reference_forward(x, params, *, groups, residual=True, attention=True):
    N, Cin, T, V = x.shape
    Cout = params["tcn_w"].shape[0]
    num_subset = 3

    def bn(xx, prefix):
        g, b = params[prefix + "_gamma"], params[prefix + "_beta"]
        m, v = params[prefix + "_mean"], params[prefix + "_var"]
        shape = [1] * xx.ndim
        shape[1] = -1
        return ((xx - m.reshape(shape)) / jnp.sqrt(v.reshape(shape) + BN_EPS)
                * g.reshape(shape) + b.reshape(shape))

    learn_A = jnp.tile(params["DecoupleA"], (1, Cout // groups, 1, 1))
    D = jnp.sum(learn_A, axis=2)
    normA = learn_A / (D[:, :, None, :] + 0.001)
    x1 = jnp.einsum('nctw,cd->ndtw', x, params["Linear_weight"]) + params["Linear_bias"].reshape(1, -1, 1, 1)
    x1 = bn(x1, "bn0").reshape(N, num_subset, Cout, T, V)
    x2 = bn(jnp.einsum('nkctv,kcvw->nctw', x1, normA), "bn_gcn")
    if Cin != Cout:
        dn = jnp.einsum('nctv,cd->ndtv', x, params["down_w"]) + params["down_b"].reshape(1, -1, 1, 1)
        dn = bn(dn, "down_bn")
    else:
        dn = x
    y = jax.nn.relu(x2 + dn)

    if attention:
        def conv1d(se, w, b):
            C, K = w.shape
            pad = (K - 1) // 2
            L = se.shape[-1]
            sp = jnp.pad(se, ((0, 0), (0, 0), (pad, K - 1 - pad)))
            win = jnp.stack([sp[..., k:k + L] for k in range(K)], axis=-1)   # (N, C, L, K)
            return jnp.einsum('nclk,ck->nl', win, w) + b
        se1 = jax.nn.sigmoid(conv1d(jnp.mean(y, axis=2), params["sa_w"], params["sa_b"]))
        y = y * se1[:, None, None, :] + y
        se2 = jax.nn.sigmoid(conv1d(jnp.mean(y, axis=3), params["ta_w"], params["ta_b"]))
        y = y * se2[:, None, :, None] + y
        sec = jnp.mean(y, axis=(2, 3))
        h = jax.nn.relu(sec @ params["fc1_w"].T + params["fc1_b"])
        s3 = jax.nn.sigmoid(h @ params["fc2_w"].T + params["fc2_b"])
        y = y * s3[:, :, None, None] + y

    yp = jnp.pad(y, ((0, 0), (0, 0), (4, 4), (0, 0)))
    win = jnp.stack([yp[:, :, k:k + T, :] for k in range(9)], axis=2)        # (N, Ci, 9, T, V)
    yt = jnp.einsum('niktv,oik->notv', win, params["tcn_w"]) + params["tcn_b"].reshape(1, -1, 1, 1)
    yt = bn(yt, "tcn_bn")

    if not residual:
        skip = 0.0
    elif Cin == Cout:
        skip = x
    else:
        skip = jnp.einsum('nctv,cd->ndtv', x, params["skip_w"]) + params["skip_b"].reshape(1, -1, 1, 1)
        skip = bn(skip, "skip_bn")
    return jax.nn.relu(yt + skip)


# ----------------------------- main -----------------------------

if __name__ == "__main__":
    key = jax.random.PRNGKey(0)
    N, Cin, Cout, T, V = 2, 4, 8, 16, 16     # small shapes; V = num_point = num_jpts
    groups = 8
    k_a, k_x, k_p = jax.random.split(key, 3)

    A = jax.random.uniform(k_a, (3, V, V), jnp.float32)      # synthetic 3-subset adjacency
    params = init_params(k_p, Cin, Cout, A, groups, V)
    x = jax.random.normal(k_x, (N, Cin, T, V), jnp.float32)  # NCHW = (N, C, T, V)

    out = tcn_gcn_unit_forward(x, params, groups=groups, stride=1,
                               residual=True, attention=True, keep_prob=1.0)
    out = jax.block_until_ready(out)
    assert out.shape == (N, Cout, T, V)

    ref = reference_forward(x, params, groups=groups, residual=True, attention=True)
    # bf16 MXU operands in the Pallas path vs f32 reference -> slightly relaxed tolerance.
    np.testing.assert_allclose(np.asarray(out), np.asarray(ref), rtol=5e-2, atol=5e-2)

    print("KERNEL_OK")
</pallas_src>

<mosaic_0001>
module attributes {stable_mosaic.version = 11 : i64} {
  func.func @_matmul_bias_affine_kernel(%arg0: i32, %arg1: memref<512x4xbf16, #tpu.memory_space<vmem>>, %arg2: memref<4x24xbf16, #tpu.memory_space<vmem>>, %arg3: memref<1x24xf32, #tpu.memory_space<vmem>>, %arg4: memref<1x24xf32, #tpu.memory_space<vmem>>, %arg5: memref<1x24xf32, #tpu.memory_space<vmem>>, %arg6: memref<512x24xf32, #tpu.memory_space<vmem>>) attributes {dimension_semantics = [#tpu.dimension_semantics<parallel>], iteration_bounds = array<i64: 1>, scalar_prefetch = 0 : i64, scratch_operands = 0 : i64, tpu.core_type = #tpu.core_type<tc>, window_params = [{transform_indices = @transform_0, window_bounds = array<i64: 512, 4>}, {pipeline_mode = #tpu.pipeline_mode<synchronous>, transform_indices = @transform_1, window_bounds = array<i64: 4, 24>}, {pipeline_mode = #tpu.pipeline_mode<synchronous>, transform_indices = @transform_2, window_bounds = array<i64: 1, 24>}, {pipeline_mode = #tpu.pipeline_mode<synchronous>, transform_indices = @transform_3, window_bounds = array<i64: 1, 24>}, {pipeline_mode = #tpu.pipeline_mode<synchronous>, transform_indices = @transform_4, window_bounds = array<i64: 1, 24>}, {transform_indices = @transform_5, window_bounds = array<i64: 512, 24>}]} {
    %c0 = arith.constant 0 : index
    %c0_0 = arith.constant 0 : index
    %0 = vector.load %arg1[%c0, %c0_0] : memref<512x4xbf16, #tpu.memory_space<vmem>>, vector<512x4xbf16>
    %c0_1 = arith.constant 0 : index
    %c0_2 = arith.constant 0 : index
    %1 = vector.load %arg2[%c0_1, %c0_2] : memref<4x24xbf16, #tpu.memory_space<vmem>>, vector<4x24xbf16>
    %cst = arith.constant dense<0.000000e+00> : vector<512x24xf32>
    %2 = tpu.matmul %0, %1, %cst {dimension_numbers = #tpu.dot_dimension_numbers<[1], [0], [0], [1], [0, 0, 1, 1], [], []>} : vector<512x4xbf16>, vector<4x24xbf16>, vector<512x24xf32> -> vector<512x24xf32>
    %c0_3 = arith.constant 0 : index
    %c0_4 = arith.constant 0 : index
    %3 = vector.load %arg3[%c0_3, %c0_4] : memref<1x24xf32, #tpu.memory_space<vmem>>, vector<1x24xf32>
    %4 = vector.broadcast %3 : vector<1x24xf32> to vector<512x24xf32>
    %5 = arith.addf %2, %4 : vector<512x24xf32>
    %c0_5 = arith.constant 0 : index
    %c0_6 = arith.constant 0 : index
    %6 = vector.load %arg4[%c0_5, %c0_6] : memref<1x24xf32, #tpu.memory_space<vmem>>, vector<1x24xf32>
    %7 = vector.broadcast %6 : vector<1x24xf32> to vector<512x24xf32>
    %8 = arith.mulf %5, %7 : vector<512x24xf32>
    %c0_7 = arith.constant 0 : index
    %c0_8 = arith.constant 0 : index
    %9 = vector.load %arg5[%c0_7, %c0_8] : memref<1x24xf32, #tpu.memory_space<vmem>>, vector<1x24xf32>
    %10 = vector.broadcast %9 : vector<1x24xf32> to vector<512x24xf32>
    %11 = arith.addf %8, %10 : vector<512x24xf32>
    %c0_9 = arith.constant 0 : index
    %c0_10 = arith.constant 0 : index
    %12 = vector.load %arg6[%c0_9, %c0_10] : memref<512x24xf32, #tpu.memory_space<vmem>>, vector<512x24xf32>
    tpu.vector_store %arg6[%c0_9, %c0_10], %11 {strides = array<i32>} : memref<512x24xf32, #tpu.memory_space<vmem>>, vector<512x24xf32>,
    return
  }
  func.func @transform_0(%arg0: i32) -> (i32, i32) {
    %c0_i32 = arith.constant 0 : i32
    %c0_i32_0 = arith.constant 0 : i32
    return %arg0, %c0_i32 : i32, i32
  }
  func.func @transform_1(%arg0: i32) -> (i32, i32) {
    %c0_i32 = arith.constant 0 : i32
    %c0_i32_0 = arith.constant 0 : i32
    %c0_i32_1 = arith.constant 0 : i32
    return %c0_i32, %c0_i32_0 : i32, i32
  }
  func.func @transform_2(%arg0: i32) -> (i32, i32) {
    %c0_i32 = arith.constant 0 : i32
    %c0_i32_0 = arith.constant 0 : i32
    %c0_i32_1 = arith.constant 0 : i32
    return %c0_i32, %c0_i32_0 : i32, i32
  }
  func.func @transform_3(%arg0: i32) -> (i32, i32) {
    %c0_i32 = arith.constant 0 : i32
    %c0_i32_0 = arith.constant 0 : i32
    %c0_i32_1 = arith.constant 0 : i32
    return %c0_i32, %c0_i32_0 : i32, i32
  }
  func.func @transform_4(%arg0: i32) -> (i32, i32) {
    %c0_i32 = arith.constant 0 : i32
    %c0_i32_0 = arith.constant 0 : i32
    %c0_i32_1 = arith.constant 0 : i32
    return %c0_i32, %c0_i32_0 : i32, i32
  }
  func.func @transform_5(%arg0: i32) -> (i32, i32) {
    %c0_i32 = arith.constant 0 : i32
    %c0_i32_0 = arith.constant 0 : i32
    return %arg0, %c0_i32 : i32, i32
  }
}

</mosaic_0001>

<llo_original>
// kernel: tpu_custom_call.1
$region0: #{tpu_custom_call.1}
  #allocation0 [shape = 'u32[]', space=smem, size = 0x4, offset = 0x4, fixed_abs, tag = 'smem constant byte address 0x4 - core index']
  #allocation1 [shape = 'u32[144,128]{1,0:T(1,128)}', space=vmem, size = 0x12000, scoped, tag = 'internal scratch']
  %s0 = inlined_call_operand.hbm [shape: bf16[512,4], index: 0, kind: input, shape index: {}]
  %s1 = inlined_call_operand.hbm [shape: bf16[4,24], index: 1, kind: input, shape index: {}]
  %s2 = inlined_call_operand.hbm [shape: f32[1,24], index: 2, kind: input, shape index: {}]
  %s3 = inlined_call_operand.hbm [shape: f32[1,24], index: 3, kind: input, shape index: {}]
  %s4 = inlined_call_operand.hbm [shape: f32[1,24], index: 4, kind: input, shape index: {}]
  %s5 = inlined_call_operand.hbm [shape: f32[512,24], index: 5, kind: output, shape index: {}]
  %s6 = sld [smem:[#allocation0]]
  $region50: #{tpu_custom_call.1} parent=0
    _
  %s8 = ssub.s32 1, %s6
  %s9 = scalar_select 0, %s8, %s6
  $region1: #{tpu_custom_call.1} parent=0
    #allocation2 [shape = 'u8[131072]{0}', space=vmem, size = 0x20000, scoped, tag = 'input window, operand 0, single buffered']
    #allocation3 [shape = 's32[1]{0}', space=sflag, size = 0x4, scoped, tag = 'scoped memory for tpu_custom_call.1']
    #allocation4 [shape = 's32[1]{0}', space=sflag, size = 0x4, scoped, tag = 'scoped memory for tpu_custom_call.1']
    #allocation5 [shape = 'u8[1024]{0}', space=vmem, size = 0x400, scoped, tag = 'input window, operand 1, single buffered']
    #allocation6 [shape = 's32[1]{0}', space=sflag, size = 0x4, scoped, tag = 'scoped memory for tpu_custom_call.1']
    #allocation7 [shape = 'u8[512]{0}', space=vmem, size = 0x400, scoped, tag = 'input window, operand 2, single buffered']
    #allocation8 [shape = 'u8[512]{0}', space=vmem, size = 0x400, scoped, tag = 'input window, operand 3, single buffered']
    #allocation9 [shape = 's32[1]{0}', space=sflag, size = 0x4, scoped, tag = 'scoped memory for tpu_custom_call.1']
    #allocation10 [shape = 'u8[512]{0}', space=vmem, size = 0x400, scoped, tag = 'input window, operand 4, single buffered']
    #allocation11 [shape = 'u8[262144]{0}', space=vmem, size = 0x40000, scoped, tag = 'output window, operand 0, single buffered']
    %10 = vsyncpa [#allocation3], 0
    %11 = vsyncpa [#allocation6], 0
    %12 = vsyncpa [#allocation9], 0
    %13 = vsyncpa [#allocation4], 0
    // Predicated region
    $region2: #{tpu_custom_call.1} parent=1 // pred_check
      _
    $region3: #{tpu_custom_call.1} parent=1 // pred_check_branch
      %15 = sbr.rel (0) target = $region5
    $region4: #{tpu_custom_call.1} parent=1 // pred_region
      %s17 = ssub.s32 4096, 4096
      %18 = vsyncadd [#allocation3], %s17
      %s19 = sshll.u32 [#allocation2], 4
      %s20 = int_to_ptr.vmem [resolvable:$true] %s19
      %25 = dma.hbm_to_vmem [thread:$0]  %s0, 4096, %s20, [#allocation3], 64, 64, 4
    $region5: #{tpu_custom_call.1} parent=1 // pred_fallthru
      _
    // Predicated region
    $region6: #{tpu_custom_call.1} parent=1 // pred_check
      _
    $region7: #{tpu_custom_call.1} parent=1 // pred_check_branch
      %27 = sbr.rel (0) target = $region9
    $region8: #{tpu_custom_call.1} parent=1 // pred_region
      %s29 = ssub.s32 32, 32
      %30 = vsyncadd [#allocation6], %s29
      %s32 = sshll.u32 [#allocation5], 4
      %s33 = int_to_ptr.vmem [resolvable:$true] %s32
      %35 = dma.hbm_to_vmem [thread:$0]  %s1, 32, %s33, [#allocation6]
    $region9: #{tpu_custom_call.1} parent=1 // pred_fallthru
      _
    // Predicated region
    $region10: #{tpu_custom_call.1} parent=1 // pred_check
      _
    $region11: #{tpu_custom_call.1} parent=1 // pred_check_branch
      %37 = sbr.rel (0) target = $region13
    $region12: #{tpu_custom_call.1} parent=1 // pred_region
      %s39 = ssub.s32 16, 16
      %40 = vsyncadd [#allocation6], %s39
      %s42 = sshll.u32 [#allocation7], 4
      %s43 = int_to_ptr.vmem [resolvable:$true] %s42
      %45 = dma.hbm_to_vmem [thread:$0]  %s2, 16, %s43, [#allocation6]
    $region13: #{tpu_custom_call.1} parent=1 // pred_fallthru
      _
    // Predicated region
    $region14: #{tpu_custom_call.1} parent=1 // pred_check
      _
    $region15: #{tpu_custom_call.1} parent=1 // pred_check_branch
      %47 = sbr.rel (0) target = $region17
    $region16: #{tpu_custom_call.1} parent=1 // pred_region
      %s49 = ssub.s32 16, 16
      %50 = vsyncadd [#allocation9], %s49
      %s52 = sshll.u32 [#allocation8], 4
      %s53 = int_to_ptr.vmem [resolvable:$true] %s52
      %55 = dma.hbm_to_vmem [thread:$0]  %s3, 16, %s53, [#allocation9]
    $region17: #{tpu_custom_call.1} parent=1 // pred_fallthru
      _
    // Predicated region
    $region18: #{tpu_custom_call.1} parent=1 // pred_check
      _
    $region19: #{tpu_custom_call.1} parent=1 // pred_check_branch
      %57 = sbr.rel (0) target = $region21
    $region20: #{tpu_custom_call.1} parent=1 // pred_region
      %s59 = ssub.s32 16, 16
      %60 = vsyncadd [#allocation9], %s59
      %s62 = sshll.u32 [#allocation10], 4
      %s63 = int_to_ptr.vmem [resolvable:$true] %s62
      %65 = dma.hbm_to_vmem [thread:$0]  %s4, 16, %s63, [#allocation9]
    $region21: #{tpu_custom_call.1} parent=1 // pred_fallthru
      _
    // Predicated region
    $region22: #{tpu_custom_call.1} parent=1 // pred_check
      _
    $region23: #{tpu_custom_call.1} parent=1 // pred_check_branch
      %67 = sbr.rel (0) target = $region25
    $region24: #{tpu_custom_call.1} parent=1 // pred_region
      %68 = dma.done [#allocation3], 4096
    $region25: #{tpu_custom_call.1} parent=1 // pred_fallthru
      _
    // Predicated region
    $region26: #{tpu_custom_call.1} parent=1 // pred_check
      _
    $region27: #{tpu_custom_call.1} parent=1 // pred_check_branch
      %70 = sbr.rel (0) target = $region29
    $region28: #{tpu_custom_call.1} parent=1 // pred_region
      %71 = dma.done [#allocation6], 32
    $region29: #{tpu_custom_call.1} parent=1 // pred_fallthru
      _
    // Predicated region
    $region30: #{tpu_custom_call.1} parent=1 // pred_check
      _
    $region31: #{tpu_custom_call.1} parent=1 // pred_check_branch
      %73 = sbr.rel (0) target = $region33
    $region32: #{tpu_custom_call.1} parent=1 // pred_region
      %74 = dma.done [#allocation6], 16
    $region33: #{tpu_custom_call.1} parent=1 // pred_fallthru
      _
    // Predicated region
    $region34: #{tpu_custom_call.1} parent=1 // pred_check
      _
    $region35: #{tpu_custom_call.1} parent=1 // pred_check_branch
      %76 = sbr.rel (0) target = $region37
    $region36: #{tpu_custom_call.1} parent=1 // pred_region
      %77 = dma.done [#allocation9], 16
    $region37: #{tpu_custom_call.1} parent=1 // pred_fallthru
      _
    // Predicated region
    $region38: #{tpu_custom_call.1} parent=1 // pred_check
      _
    $region39: #{tpu_custom_call.1} parent=1 // pred_check_branch
      %79 = sbr.rel (0) target = $region41
    $region40: #{tpu_custom_call.1} parent=1 // pred_region
      %80 = dma.done [#allocation9], 16
    $region41: #{tpu_custom_call.1} parent=1 // pred_fallthru
      _
    %v82 = vld [vmem:[#allocation2] sm:$0xf]
    %v83 = vld [vmem:[#allocation2 + $0x4] sm:$0xf]
    %v84 = vld [vmem:[#allocation2 + $0x8] sm:$0xf]
    %v85 = vld [vmem:[#allocation2 + $0xc] sm:$0xf]
    %v86 = vld [vmem:[#allocation2 + $0x10] sm:$0xf]
    %v87 = vld [vmem:[#allocation2 + $0x14] sm:$0xf]
    %v88 = vld [vmem:[#allocation2 + $0x18] sm:$0xf]
    %v89 = vld [vmem:[#allocation2 + $0x1c] sm:$0xf]
    %v90 = vld [vmem:[#allocation2 + $0x20] sm:$0xf]
    %v91 = vld [vmem:[#allocation2 + $0x24] sm:$0xf]
    %v92 = vld [vmem:[#allocation2 + $0x28] sm:$0xf]
    %v93 = vld [vmem:[#allocation2 + $0x2c] sm:$0xf]
    %v94 = vld [vmem:[#allocation2 + $0x30] sm:$0xf]
    %v95 = vld [vmem:[#allocation2 + $0x34] sm:$0xf]
    %v96 = vld [vmem:[#allocation2 + $0x38] sm:$0xf]
    %v97 = vld [vmem:[#allocation2 + $0x3c] sm:$0xf]
    %v98 = vld [vmem:[#allocation2 + $0x40] sm:$0xf]
    %v99 = vld [vmem:[#allocation2 + $0x44] sm:$0xf]
    %v100 = vld [vmem:[#allocation2 + $0x48] sm:$0xf]
    %v101 = vld [vmem:[#allocation2 + $0x4c] sm:$0xf]
    %v102 = vld [vmem:[#allocation2 + $0x50] sm:$0xf]
    %v103 = vld [vmem:[#allocation2 + $0x54] sm:$0xf]
    %v104 = vld [vmem:[#allocation2 + $0x58] sm:$0xf]
    %v105 = vld [vmem:[#allocation2 + $0x5c] sm:$0xf]
    %v106 = vld [vmem:[#allocation2 + $0x60] sm:$0xf]
    %v107 = vld [vmem:[#allocation2 + $0x64] sm:$0xf]
    %v108 = vld [vmem:[#allocation2 + $0x68] sm:$0xf]
    %v109 = vld [vmem:[#allocation2 + $0x6c] sm:$0xf]
    %v110 = vld [vmem:[#allocation2 + $0x70] sm:$0xf]
    %v111 = vld [vmem:[#allocation2 + $0x74] sm:$0xf]
    %v112 = vld [vmem:[#allocation2 + $0x78] sm:$0xf]
    %v113 = vld [vmem:[#allocation2 + $0x7c] sm:$0xf]
    %v114 = vld [vmem:[#allocation2 + $0x80] sm:$0xf]
    %v115 = vld [vmem:[#allocation2 + $0x84] sm:$0xf]
    %v116 = vld [vmem:[#allocation2 + $0x88] sm:$0xf]
    %v117 = vld [vmem:[#allocation2 + $0x8c] sm:$0xf]
    %v118 = vld [vmem:[#allocation2 + $0x90] sm:$0xf]
    %v119 = vld [vmem:[#allocation2 + $0x94] sm:$0xf]
    %v120 = vld [vmem:[#allocation2 + $0x98] sm:$0xf]
    %v121 = vld [vmem:[#allocation2 + $0x9c] sm:$0xf]
    %v122 = vld [vmem:[#allocation2 + $0xa0] sm:$0xf]
    %v123 = vld [vmem:[#allocation2 + $0xa4] sm:$0xf]
    %v124 = vld [vmem:[#allocation2 + $0xa8] sm:$0xf]
    %v125 = vld [vmem:[#allocation2 + $0xac] sm:$0xf]
    %v126 = vld [vmem:[#allocation2 + $0xb0] sm:$0xf]
    %v127 = vld [vmem:[#allocation2 + $0xb4] sm:$0xf]
    %v128 = vld [vmem:[#allocation2 + $0xb8] sm:$0xf]
    %v129 = vld [vmem:[#allocation2 + $0xbc] sm:$0xf]
    %v130 = vld [vmem:[#allocation2 + $0xc0] sm:$0xf]
    %v131 = vld [vmem:[#allocation2 + $0xc4] sm:$0xf]
    %v132 = vld [vmem:[#allocation2 + $0xc8] sm:$0xf]
    %v133 = vld [vmem:[#allocation2 + $0xcc] sm:$0xf]
    %v134 = vld [vmem:[#allocation2 + $0xd0] sm:$0xf]
    %v135 = vld [vmem:[#allocation2 + $0xd4] sm:$0xf]
    %v136 = vld [vmem:[#allocation2 + $0xd8] sm:$0xf]
    %v137 = vld [vmem:[#allocation2 + $0xdc] sm:$0xf]
    %v138 = vld [vmem:[#allocation2 + $0xe0] sm:$0xf]
    %v139 = vld [vmem:[#allocation2 + $0xe4] sm:$0xf]
    %v140 = vld [vmem:[#allocation2 + $0xe8] sm:$0xf]
    %v141 = vld [vmem:[#allocation2 + $0xec] sm:$0xf]
    %v142 = vld [vmem:[#allocation2 + $0xf0] sm:$0xf]
    %v143 = vld [vmem:[#allocation2 + $0xf4] sm:$0xf]
    %v144 = vld [vmem:[#allocation2 + $0xf8] sm:$0xf]
    %v145 = vld [vmem:[#allocation2 + $0xfc] sm:$0xf]
    %v146 = vld [vmem:[#allocation5] sm:$0x3]
    %v147 = vld [vmem:[#allocation7] sm:$0x1]
    %v149 = vlaneseq
    %v150 = vshrl.u32 %v149, 7
    %v151 = vsub.s32 0, %v150
    %v152 = vrot.slane %v147, %v151
    %v218 = vunpack.c.l.b16 %v82
    %v219 = vunpack.c.l.b16 %v83
    %v220 = vunpack.c.l.b16 %v84
    %v221 = vunpack.c.l.b16 %v85
    %v222 = vunpack.c.l.b16 %v86
    %v223 = vunpack.c.l.b16 %v87
    %v224 = vunpack.c.l.b16 %v88
    %v225 = vunpack.c.l.b16 %v89
    %v226 = vunpack.c.l.b16 %v90
    %v227 = vunpack.c.l.b16 %v91
    %v228 = vunpack.c.l.b16 %v92
    %v229 = vunpack.c.l.b16 %v93
    %v230 = vunpack.c.l.b16 %v94
    %v231 = vunpack.c.l.b16 %v95
    %v232 = vunpack.c.l.b16 %v96
    %v233 = vunpack.c.l.b16 %v97
    %v234 = vunpack.c.l.b16 %v98
    %v235 = vunpack.c.l.b16 %v99
    %v236 = vunpack.c.l.b16 %v100
    %v237 = vunpack.c.l.b16 %v101
    %v238 = vunpack.c.l.b16 %v102
    %v239 = vunpack.c.l.b16 %v103
    %v240 = vunpack.c.l.b16 %v104
    %v241 = vunpack.c.l.b16 %v105
    %v242 = vunpack.c.l.b16 %v106
    %v243 = vunpack.c.l.b16 %v107
    %v244 = vunpack.c.l.b16 %v108
    %v245 = vunpack.c.l.b16 %v109
    %v246 = vunpack.c.l.b16 %v110
    %v247 = vunpack.c.l.b16 %v111
    %v248 = vunpack.c.l.b16 %v112
    %v249 = vunpack.c.l.b16 %v113
    %v250 = vunpack.c.l.b16 %v114
    %v251 = vunpack.c.l.b16 %v115
    %v252 = vunpack.c.l.b16 %v116
    %v253 = vunpack.c.l.b16 %v117
    %v254 = vunpack.c.l.b16 %v118
    %v255 = vunpack.c.l.b16 %v119
    %v256 = vunpack.c.l.b16 %v120
    %v257 = vunpack.c.l.b16 %v121
    %v258 = vunpack.c.l.b16 %v122
    %v259 = vunpack.c.l.b16 %v123
    %v260 = vunpack.c.l.b16 %v124
    %v261 = vunpack.c.l.b16 %v125
    %v262 = vunpack.c.l.b16 %v126
    %v263 = vunpack.c.l.b16 %v127
    %v264 = vunpack.c.l.b16 %v128
    %v265 = vunpack.c.l.b16 %v129
    %v266 = vunpack.c.l.b16 %v130
    %v267 = vunpack.c.l.b16 %v131
    %v268 = vunpack.c.l.b16 %v132
    %v269 = vunpack.c.l.b16 %v133
    %v270 = vunpack.c.l.b16 %v134
    %v271 = vunpack.c.l.b16 %v135
    %v272 = vunpack.c.l.b16 %v136
    %v273 = vunpack.c.l.b16 %v137
    %v274 = vunpack.c.l.b16 %v138
    %v275 = vunpack.c.l.b16 %v139
    %v276 = vunpack.c.l.b16 %v140
    %v277 = vunpack.c.l.b16 %v141
    %v278 = vunpack.c.l.b16 %v142
    %v279 = vunpack.c.l.b16 %v143
    %v280 = vunpack.c.l.b16 %v144
    %v281 = vunpack.c.l.b16 %v145
    %v282 = vpack.c.b16 %v219, %v218
    %v283 = vpack.c.b16 %v221, %v220
    %v284 = vpack.c.b16 %v223, %v222
    %v285 = vpack.c.b16 %v225, %v224
    %v286 = vpack.c.b16 %v227, %v226
    %v287 = vpack.c.b16 %v229, %v228
    %v288 = vpack.c.b16 %v231, %v230
    %v289 = vpack.c.b16 %v233, %v232
    %v290 = vpack.c.b16 %v235, %v234
    %v291 = vpack.c.b16 %v237, %v236
    %v292 = vpack.c.b16 %v239, %v238
    %v293 = vpack.c.b16 %v241, %v240
    %v294 = vpack.c.b16 %v243, %v242
    %v295 = vpack.c.b16 %v245, %v244
    %v296 = vpack.c.b16 %v247, %v246
    %v297 = vpack.c.b16 %v249, %v248
    %v298 = vpack.c.b16 %v251, %v250
    %v299 = vpack.c.b16 %v253, %v252
    %v300 = vpack.c.b16 %v255, %v254
    %v301 = vpack.c.b16 %v257, %v256
    %v302 = vpack.c.b16 %v259, %v258
    %v303 = vpack.c.b16 %v261, %v260
    %v304 = vpack.c.b16 %v263, %v262
    %v305 = vpack.c.b16 %v265, %v264
    %v306 = vpack.c.b16 %v267, %v266
    %v307 = vpack.c.b16 %v269, %v268
    %v308 = vpack.c.b16 %v271, %v270
    %v309 = vpack.c.b16 %v273, %v272
    %v310 = vpack.c.b16 %v275, %v274
    %v311 = vpack.c.b16 %v277, %v276
    %v312 = vpack.c.b16 %v279, %v278
    %v313 = vpack.c.b16 %v281, %v280
    %vm314 = vcmask 31744
    %v316 = vsel %vm314, %v282, 0
    %v319 = vsel %vm314, %v283, 0
    %v322 = vsel %vm314, %v284, 0
    %v325 = vsel %vm314, %v285, 0
    %v328 = vsel %vm314, %v286, 0
    %v331 = vsel %vm314, %v287, 0
    %v334 = vsel %vm314, %v288, 0
    %v337 = vsel %vm314, %v289, 0
    %v340 = vsel %vm314, %v290, 0
    %v343 = vsel %vm314, %v291, 0
    %v346 = vsel %vm314, %v292, 0
    %v349 = vsel %vm314, %v293, 0
    %v352 = vsel %vm314, %v294, 0
    %v355 = vsel %vm314, %v295, 0
    %v358 = vsel %vm314, %v296, 0
    %v361 = vsel %vm314, %v297, 0
    %v364 = vsel %vm314, %v298, 0
    %v367 = vsel %vm314, %v299, 0
    %v370 = vsel %vm314, %v300, 0
    %v373 = vsel %vm314, %v301, 0
    %v376 = vsel %vm314, %v302, 0
    %v379 = vsel %vm314, %v303, 0
    %v382 = vsel %vm314, %v304, 0
    %v385 = vsel %vm314, %v305, 0
    %v388 = vsel %vm314, %v306, 0
    %v391 = vsel %vm314, %v307, 0
    %v394 = vsel %vm314, %v308, 0
    %v397 = vsel %vm314, %v309, 0
    %v400 = vsel %vm314, %v310, 0
    %v403 = vsel %vm314, %v311, 0
    %v406 = vsel %vm314, %v312, 0
    %v409 = vsel %vm314, %v313, 0
    %vm411 = vcmask 1041408
    %v413 = vsel %vm411, %v146, 0
    %415 = vmatprep.subr.bf16.mxu0 0
    %416 = vmatpush1.bf16.msra.mxu0 %v413
    %417 = vmatprep.subr.bf16.mxu0 0
    %418 = vmatpush1.bf16.msra.mxu0 0
    %419 = vmatprep.subr.bf16.mxu0 0
    %420 = vmatpush1.bf16.msra.mxu0 0
    %421 = vmatprep.subr.bf16.mxu0 0
    %422 = vmatpush1.bf16.msra.mxu0 0
    %423 = vmatprep.subr.bf16.mxu0 0
    %424 = vmatpush1.bf16.msra.mxu0 0
    %425 = vmatprep.subr.bf16.mxu0 0
    %426 = vmatpush1.bf16.msra.mxu0 0
    %427 = vmatprep.subr.bf16.mxu0 0
    %428 = vmatpush1.bf16.msra.mxu0 0
    %429 = vmatprep.subr.bf16.mxu0 0
    %430 = vmatpush1.bf16.msra.mxu0 0
    %431 = vmatprep.subr.bf16.mxu0 0
    %432 = vmatpush1.bf16.msra.mxu0 0
    %433 = vmatprep.subr.bf16.mxu0 0
    %434 = vmatpush1.bf16.msra.mxu0 0
    %435 = vmatprep.subr.bf16.mxu0 0
    %436 = vmatpush1.bf16.msra.mxu0 0
    %437 = vmatprep.subr.bf16.mxu0 0
    %438 = vmatpush1.bf16.msra.mxu0 0
    %439 = vmatprep.subr.bf16.mxu0 0
    %440 = vmatpush1.bf16.msra.mxu0 0
    %441 = vmatprep.subr.bf16.mxu0 0
    %442 = vmatpush1.bf16.msra.mxu0 0
    %443 = vmatprep.subr.bf16.mxu0 0
    %444 = vmatpush1.bf16.msra.mxu0 0
    %445 = vmatprep.subr.bf16.mxu0 0
    %446 = vmatpush1.bf16.msra.mxu0 0
    %447 = vmatprep.mubr.bf16.mxu0 0
    %448 = vmatmul.mubr.bf16.gmra.mrb[0].mxu0 %v316
    %v449 = vpop.f32.mrb[0].mxu0
    %v450 = vadd.f32 %v152, %v449
    %v451 = vpop.f32.mrb[0].mxu0
    %v452 = vpop.f32.mrb[0].mxu0
    %v453 = vadd.f32 %v152, %v452
    %v454 = vpop.f32.mrb[0].mxu0
    %455 = vmatprep.mubr.bf16.mxu0 0
    %456 = vmatmul.mubr.bf16.gmra.mrb[0].mxu0 %v319
    %v457 = vpop.f32.mrb[0].mxu0
    %v458 = vadd.f32 %v152, %v457
    %v459 = vpop.f32.mrb[0].mxu0
    %v460 = vpop.f32.mrb[0].mxu0
    %v461 = vadd.f32 %v152, %v460
    %v462 = vpop.f32.mrb[0].mxu0
    %463 = vmatprep.mubr.bf16.mxu0 0
    %464 = vmatmul.mubr.bf16.gmra.mrb[0].mxu0 %v322
    %v465 = vpop.f32.mrb[0].mxu0
    %v466 = vadd.f32 %v152, %v465
    %v467 = vpop.f32.mrb[0].mxu0
    %v468 = vpop.f32.mrb[0].mxu0
    %v469 = vadd.f32 %v152, %v468
    %v470 = vpop.f32.mrb[0].mxu0
    %471 = vmatprep.mubr.bf16.mxu0 0
    %472 = vmatmul.mubr.bf16.gmra.mrb[0].mxu0 %v325
    %v473 = vpop.f32.mrb[0].mxu0
    %v474 = vadd.f32 %v152, %v473
    %v475 = vpop.f32.mrb[0].mxu0
    %v476 = vpop.f32.mrb[0].mxu0
    %v477 = vadd.f32 %v152, %v476
    %v478 = vpop.f32.mrb[0].mxu0
    %479 = vmatprep.mubr.bf16.mxu0 0
    %480 = vmatmul.mubr.bf16.gmra.mrb[0].mxu0 %v328
    %v481 = vpop.f32.mrb[0].mxu0
    %v482 = vadd.f32 %v152, %v481
    %v483 = vpop.f32.mrb[0].mxu0
    %v484 = vpop.f32.mrb[0].mxu0
    %v485 = vadd.f32 %v152, %v484
    %v486 = vpop.f32.mrb[0].mxu0
    %487 = vmatprep.mubr.bf16.mxu0 0
    %488 = vmatmul.mubr.bf16.gmra.mrb[0].mxu0 %v331
    %v489 = vpop.f32.mrb[0].mxu0
    %v490 = vadd.f32 %v152, %v489
    %v491 = vpop.f32.mrb[0].mxu0
    %v492 = vpop.f32.mrb[0].mxu0
    %v493 = vadd.f32 %v152, %v492
    %v494 = vpop.f32.mrb[0].mxu0
    %495 = vmatprep.mubr.bf16.mxu0 0
    %496 = vmatmul.mubr.bf16.gmra.mrb[0].mxu0 %v334
    %v497 = vpop.f32.mrb[0].mxu0
    %v498 = vadd.f32 %v152, %v497
    %v499 = vpop.f32.mrb[0].mxu0
    %v500 = vpop.f32.mrb[0].mxu0
    %v501 = vadd.f32 %v152, %v500
    %v502 = vpop.f32.mrb[0].mxu0
    %503 = vmatprep.mubr.bf16.mxu0 0
    %504 = vmatmul.mubr.bf16.gmra.mrb[0].mxu0 %v337
    %v505 = vpop.f32.mrb[0].mxu0
    %v506 = vadd.f32 %v152, %v505
    %v507 = vpop.f32.mrb[0].mxu0
    %v508 = vpop.f32.mrb[0].mxu0
    %v509 = vadd.f32 %v152, %v508
    %v510 = vpop.f32.mrb[0].mxu0
    %511 = vmatprep.mubr.bf16.mxu0 0
    %512 = vmatmul.mubr.bf16.gmra.mrb[0].mxu0 %v340
    %v513 = vpop.f32.mrb[0].mxu0
    %v514 = vadd.f32 %v152, %v513
    %v515 = vpop.f32.mrb[0].mxu0
    %v516 = vpop.f32.mrb[0].mxu0
    %v517 = vadd.f32 %v152, %v516
    %v518 = vpop.f32.mrb[0].mxu0
    %519 = vmatprep.mubr.bf16.mxu0 0
    %520 = vmatmul.mubr.bf16.gmra.mrb[0].mxu0 %v343
    %v521 = vpop.f32.mrb[0].mxu0
    %v522 = vadd.f32 %v152, %v521
    %v523 = vpop.f32.mrb[0].mxu0
    %v524 = vpop.f32.mrb[0].mxu0
    %v525 = vadd.f32 %v152, %v524
    %v526 = vpop.f32.mrb[0].mxu0
    %527 = vmatprep.mubr.bf16.mxu0 0
    %528 = vmatmul.mubr.bf16.gmra.mrb[0].mxu0 %v346
    %v529 = vpop.f32.mrb[0].mxu0
    %v530 = vadd.f32 %v152, %v529
    %v531 = vpop.f32.mrb[0].mxu0
    %v532 = vpop.f32.mrb[0].mxu0
    %v533 = vadd.f32 %v152, %v532
    %v534 = vpop.f32.mrb[0].mxu0
    %535 = vmatprep.mubr.bf16.mxu0 0
    %536 = vmatmul.mubr.bf16.gmra.mrb[0].mxu0 %v349
    %v537 = vpop.f32.mrb[0].mxu0
    %v538 = vadd.f32 %v152, %v537
    %v539 = vpop.f32.mrb[0].mxu0
    %v540 = vpop.f32.mrb[0].mxu0
    %v541 = vadd.f32 %v152, %v540
    %v542 = vpop.f32.mrb[0].mxu0
    %543 = vmatprep.mubr.bf16.mxu0 0
    %544 = vmatmul.mubr.bf16.gmra.mrb[0].mxu0 %v352
    %v545 = vpop.f32.mrb[0].mxu0
    %v546 = vadd.f32 %v152, %v545
    %v547 = vpop.f32.mrb[0].mxu0
    %v548 = vpop.f32.mrb[0].mxu0
    %v549 = vadd.f32 %v152, %v548
    %v550 = vpop.f32.mrb[0].mxu0
    %551 = vmatprep.mubr.bf16.mxu0 0
    %552 = vmatmul.mubr.bf16.gmra.mrb[0].mxu0 %v355
    %v553 = vpop.f32.mrb[0].mxu0
    %v554 = vadd.f32 %v152, %v553
    %v555 = vpop.f32.mrb[0].mxu0
    %v556 = vpop.f32.mrb[0].mxu0
    %v557 = vadd.f32 %v152, %v556
    %v558 = vpop.f32.mrb[0].mxu0
    %559 = vmatprep.mubr.bf16.mxu0 0
    %560 = vmatmul.mubr.bf16.gmra.mrb[0].mxu0 %v358
    %v561 = vpop.f32.mrb[0].mxu0
    %v562 = vadd.f32 %v152, %v561
    %v563 = vpop.f32.mrb[0].mxu0
    %v564 = vpop.f32.mrb[0].mxu0
    %v565 = vadd.f32 %v152, %v564
    %v566 = vpop.f32.mrb[0].mxu0
    %567 = vmatprep.mubr.bf16.mxu0 0
    %568 = vmatmul.mubr.bf16.gmra.mrb[0].mxu0 %v361
    %v569 = vpop.f32.mrb[0].mxu0
    %v570 = vadd.f32 %v152, %v569
    %v571 = vpop.f32.mrb[0].mxu0
    %v572 = vpop.f32.mrb[0].mxu0
    %v573 = vadd.f32 %v152, %v572
    %v574 = vpop.f32.mrb[0].mxu0
    %575 = vmatprep.mubr.bf16.mxu0 0
    %576 = vmatmul.mubr.bf16.gmra.mrb[0].mxu0 %v364
    %v577 = vpop.f32.mrb[0].mxu0
    %v578 = vadd.f32 %v152, %v577
    %v579 = vpop.f32.mrb[0].mxu0
    %v580 = vpop.f32.mrb[0].mxu0
    %v581 = vadd.f32 %v152, %v580
    %v582 = vpop.f32.mrb[0].mxu0
    %583 = vmatprep.mubr.bf16.mxu0 0
    %584 = vmatmul.mubr.bf16.gmra.mrb[0].mxu0 %v367
    %v585 = vpop.f32.mrb[0].mxu0
    %v586 = vadd.f32 %v152, %v585
    %v587 = vpop.f32.mrb[0].mxu0
    %v588 = vpop.f32.mrb[0].mxu0
    %v589 = vadd.f32 %v152, %v588
    %v590 = vpop.f32.mrb[0].mxu0
    %591 = vmatprep.mubr.bf16.mxu0 0
    %592 = vmatmul.mubr.bf16.gmra.mrb[0].mxu0 %v370
    %v593 = vpop.f32.mrb[0].mxu0
    %v594 = vadd.f32 %v152, %v593
    %v595 = vpop.f32.mrb[0].mxu0
    %v596 = vpop.f32.mrb[0].mxu0
    %v597 = vadd.f32 %v152, %v596
    %v598 = vpop.f32.mrb[0].mxu0
    %599 = vmatprep.mubr.bf16.mxu0 0
    %600 = vmatmul.mubr.bf16.gmra.mrb[0].mxu0 %v373
    %v601 = vpop.f32.mrb[0].mxu0
    %v602 = vadd.f32 %v152, %v601
    %v603 = vpop.f32.mrb[0].mxu0
    %v604 = vpop.f32.mrb[0].mxu0
    %v605 = vadd.f32 %v152, %v604
    %v606 = vpop.f32.mrb[0].mxu0
    %607 = vmatprep.mubr.bf16.mxu0 0
    %608 = vmatmul.mubr.bf16.gmra.mrb[0].mxu0 %v376
    %v609 = vpop.f32.mrb[0].mxu0
    %v610 = vadd.f32 %v152, %v609
    %v611 = vpop.f32.mrb[0].mxu0
    %v612 = vpop.f32.mrb[0].mxu0
    %v613 = vadd.f32 %v152, %v612
    %v614 = vpop.f32.mrb[0].mxu0
    %615 = vmatprep.mubr.bf16.mxu0 0
    %616 = vmatmul.mubr.bf16.gmra.mrb[0].mxu0 %v379
    %v617 = vpop.f32.mrb[0].mxu0
    %v618 = vadd.f32 %v152, %v617
    %v619 = vpop.f32.mrb[0].mxu0
    %v620 = vpop.f32.mrb[0].mxu0
    %v621 = vadd.f32 %v152, %v620
    %v622 = vpop.f32.mrb[0].mxu0
    %623 = vmatprep.mubr.bf16.mxu0 0
    %624 = vmatmul.mubr.bf16.gmra.mrb[0].mxu0 %v382
    %v625 = vpop.f32.mrb[0].mxu0
    %v626 = vadd.f32 %v152, %v625
    %v627 = vpop.f32.mrb[0].mxu0
    %v628 = vpop.f32.mrb[0].mxu0
    %v629 = vadd.f32 %v152, %v628
    %v630 = vpop.f32.mrb[0].mxu0
    %631 = vmatprep.mubr.bf16.mxu0 0
    %632 = vmatmul.mubr.bf16.gmra.mrb[0].mxu0 %v385
    %v633 = vpop.f32.mrb[0].mxu0
    %v634 = vadd.f32 %v152, %v633
    %v635 = vpop.f32.mrb[0].mxu0
    %v636 = vpop.f32.mrb[0].mxu0
    %v637 = vadd.f32 %v152, %v636
    %v638 = vpop.f32.mrb[0].mxu0
    %639 = vmatprep.mubr.bf16.mxu0 0
    %640 = vmatmul.mubr.bf16.gmra.mrb[0].mxu0 %v388
    %v641 = vpop.f32.mrb[0].mxu0
    %v642 = vadd.f32 %v152, %v641
    %v643 = vpop.f32.mrb[0].mxu0
    %v644 = vpop.f32.mrb[0].mxu0
    %v645 = vadd.f32 %v152, %v644
    %v646 = vpop.f32.mrb[0].mxu0
    %647 = vmatprep.mubr.bf16.mxu0 0
    %648 = vmatmul.mubr.bf16.gmra.mrb[0].mxu0 %v391
    %v649 = vpop.f32.mrb[0].mxu0
    %v650 = vadd.f32 %v152, %v649
    %v651 = vpop.f32.mrb[0].mxu0
    %v652 = vpop.f32.mrb[0].mxu0
    %v653 = vadd.f32 %v152, %v652
    %v654 = vpop.f32.mrb[0].mxu0
    %655 = vmatprep.mubr.bf16.mxu0 0
    %656 = vmatmul.mubr.bf16.gmra.mrb[0].mxu0 %v394
    %v657 = vpop.f32.mrb[0].mxu0
    %v658 = vadd.f32 %v152, %v657
    %v659 = vpop.f32.mrb[0].mxu0
    %v660 = vpop.f32.mrb[0].mxu0
    %v661 = vadd.f32 %v152, %v660
    %v662 = vpop.f32.mrb[0].mxu0
    %663 = vmatprep.mubr.bf16.mxu0 0
    %664 = vmatmul.mubr.bf16.gmra.mrb[0].mxu0 %v397
    %v665 = vpop.f32.mrb[0].mxu0
    %v666 = vadd.f32 %v152, %v665
    %v667 = vpop.f32.mrb[0].mxu0
    %v668 = vpop.f32.mrb[0].mxu0
    %v669 = vadd.f32 %v152, %v668
    %v670 = vpop.f32.mrb[0].mxu0
    %671 = vmatprep.mubr.bf16.mxu0 0
    %672 = vmatmul.mubr.bf16.gmra.mrb[0].mxu0 %v400
    %v673 = vpop.f32.mrb[0].mxu0
    %v674 = vadd.f32 %v152, %v673
    %v675 = vpop.f32.mrb[0].mxu0
    %v676 = vpop.f32.mrb[0].mxu0
    %v677 = vadd.f32 %v152, %v676
    %v678 = vpop.f32.mrb[0].mxu0
    %679 = vmatprep.mubr.bf16.mxu0 0
    %680 = vmatmul.mubr.bf16.gmra.mrb[0].mxu0 %v403
    %v681 = vpop.f32.mrb[0].mxu0
    %v682 = vadd.f32 %v152, %v681
    %v683 = vpop.f32.mrb[0].mxu0
    %v684 = vpop.f32.mrb[0].mxu0
    %v685 = vadd.f32 %v152, %v684
    %v686 = vpop.f32.mrb[0].mxu0
    %687 = vmatprep.mubr.bf16.mxu0 0
    %688 = vmatmul.mubr.bf16.gmra.mrb[0].mxu0 %v406
    %v689 = vpop.f32.mrb[0].mxu0
    %v690 = vadd.f32 %v152, %v689
    %v691 = vpop.f32.mrb[0].mxu0
    %v692 = vpop.f32.mrb[0].mxu0
    %v693 = vadd.f32 %v152, %v692
    %v694 = vpop.f32.mrb[0].mxu0
    %695 = vmatprep.mubr.bf16.mxu0 0
    %696 = vmatmul.mubr.bf16.gmra.mrb[0].mxu0 %v409
    %v697 = vpop.f32.mrb[0].mxu0
    %v698 = vadd.f32 %v152, %v697
    %v699 = vpop.f32.mrb[0].mxu0
    %v700 = vpop.f32.mrb[0].mxu0
    %v701 = vadd.f32 %v152, %v700
    %v702 = vpop.f32.mrb[0].mxu0
    %703 = vdwg.mxu0
    %v704 = vld [vmem:[#allocation8] sm:$0x1]
    %v706 = vlaneseq
    %v707 = vshrl.u32 %v706, 7
    %v708 = vsub.s32 0, %v707
    %v709 = vrot.slane %v704, %v708
    %v711 = vmul.f32 %v450, %v709
    %v712 = vmul.f32 %v453, %v709
    %v713 = vmul.f32 %v458, %v709
    %v714 = vmul.f32 %v461, %v709
    %v715 = vmul.f32 %v466, %v709
    %v716 = vmul.f32 %v469, %v709
    %v717 = vmul.f32 %v474, %v709
    %v718 = vmul.f32 %v477, %v709
    %v719 = vmul.f32 %v482, %v709
    %v720 = vmul.f32 %v485, %v709
    %v721 = vmul.f32 %v490, %v709
    %v722 = vmul.f32 %v493, %v709
    %v723 = vmul.f32 %v498, %v709
    %v724 = vmul.f32 %v501, %v709
    %v725 = vmul.f32 %v506, %v709
    %v726 = vmul.f32 %v509, %v709
    %v727 = vmul.f32 %v514, %v709
    %v728 = vmul.f32 %v517, %v709
    %v729 = vmul.f32 %v522, %v709
    %v730 = vmul.f32 %v525, %v709
    %v731 = vmul.f32 %v530, %v709
    %v732 = vmul.f32 %v533, %v709
    %v733 = vmul.f32 %v538, %v709
    %v734 = vmul.f32 %v541, %v709
    %v735 = vmul.f32 %v546, %v709
    %v736 = vmul.f32 %v549, %v709
    %v737 = vmul.f32 %v554, %v709
    %v738 = vmul.f32 %v557, %v709
    %v739 = vmul.f32 %v562, %v709
    %v740 = vmul.f32 %v565, %v709
    %v741 = vmul.f32 %v570, %v709
    %v742 = vmul.f32 %v573, %v709
    %v743 = vmul.f32 %v578, %v709
    %v744 = vmul.f32 %v581, %v709
    %v745 = vmul.f32 %v586, %v709
    %v746 = vmul.f32 %v589, %v709
    %v747 = vmul.f32 %v594, %v709
    %v748 = vmul.f32 %v597, %v709
    %v749 = vmul.f32 %v602, %v709
    %v750 = vmul.f32 %v605, %v709
    %v751 = vmul.f32 %v610, %v709
    %v752 = vmul.f32 %v613, %v709
    %v753 = vmul.f32 %v618, %v709
    %v754 = vmul.f32 %v621, %v709
    %v755 = vmul.f32 %v626, %v709
    %v756 = vmul.f32 %v629, %v709
    %v757 = vmul.f32 %v634, %v709
    %v758 = vmul.f32 %v637, %v709
    %v759 = vmul.f32 %v642, %v709
    %v760 = vmul.f32 %v645, %v709
    %v761 = vmul.f32 %v650, %v709
    %v762 = vmul.f32 %v653, %v709
    %v763 = vmul.f32 %v658, %v709
    %v764 = vmul.f32 %v661, %v709
    %v765 = vmul.f32 %v666, %v709
    %v766 = vmul.f32 %v669, %v709
    %v767 = vmul.f32 %v674, %v709
    %v768 = vmul.f32 %v677, %v709
    %v769 = vmul.f32 %v682, %v709
    %v770 = vmul.f32 %v685, %v709
    %v771 = vmul.f32 %v690, %v709
    %v772 = vmul.f32 %v693, %v709
    %v773 = vmul.f32 %v698, %v709
    %v774 = vmul.f32 %v701, %v709
    %v775 = vld [vmem:[#allocation10] sm:$0x1]
    %v777 = vlaneseq
    %v778 = vshrl.u32 %v777, 7
    %v779 = vsub.s32 0, %v778
    %v780 = vrot.slane %v775, %v779
    %v782 = vadd.f32 %v711, %v780
    %v783 = vadd.f32 %v712, %v780
    %v784 = vadd.f32 %v713, %v780
    %v785 = vadd.f32 %v714, %v780
    %v786 = vadd.f32 %v715, %v780
    %v787 = vadd.f32 %v716, %v780
    %v788 = vadd.f32 %v717, %v780
    %v789 = vadd.f32 %v718, %v780
    %v790 = vadd.f32 %v719, %v780
    %v791 = vadd.f32 %v720, %v780
    %v792 = vadd.f32 %v721, %v780
    %v793 = vadd.f32 %v722, %v780
    %v794 = vadd.f32 %v723, %v780
    %v795 = vadd.f32 %v724, %v780
    %v796 = vadd.f32 %v725, %v780
    %v797 = vadd.f32 %v726, %v780
    %v798 = vadd.f32 %v727, %v780
    %v799 = vadd.f32 %v728, %v780
    %v800 = vadd.f32 %v729, %v780
    %v801 = vadd.f32 %v730, %v780
    %v802 = vadd.f32 %v731, %v780
    %v803 = vadd.f32 %v732, %v780
    %v804 = vadd.f32 %v733, %v780
    %v805 = vadd.f32 %v734, %v780
    %v806 = vadd.f32 %v735, %v780
    %v807 = vadd.f32 %v736, %v780
    %v808 = vadd.f32 %v737, %v780
    %v809 = vadd.f32 %v738, %v780
    %v810 = vadd.f32 %v739, %v780
    %v811 = vadd.f32 %v740, %v780
    %v812 = vadd.f32 %v741, %v780
    %v813 = vadd.f32 %v742, %v780
    %v814 = vadd.f32 %v743, %v780
    %v815 = vadd.f32 %v744, %v780
    %v816 = vadd.f32 %v745, %v780
    %v817 = vadd.f32 %v746, %v780
    %v818 = vadd.f32 %v747, %v780
    %v819 = vadd.f32 %v748, %v780
    %v820 = vadd.f32 %v749, %v780
    %v821 = vadd.f32 %v750, %v780
    %v822 = vadd.f32 %v751, %v780
    %v823 = vadd.f32 %v752, %v780
    %v824 = vadd.f32 %v753, %v780
    %v825 = vadd.f32 %v754, %v780
    %v826 = vadd.f32 %v755, %v780
    %v827 = vadd.f32 %v756, %v780
    %v828 = vadd.f32 %v757, %v780
    %v829 = vadd.f32 %v758, %v780
    %v830 = vadd.f32 %v759, %v780
    %v831 = vadd.f32 %v760, %v780
    %v832 = vadd.f32 %v761, %v780
    %v833 = vadd.f32 %v762, %v780
    %v834 = vadd.f32 %v763, %v780
    %v835 = vadd.f32 %v764, %v780
    %v836 = vadd.f32 %v765, %v780
    %v837 = vadd.f32 %v766, %v780
    %v838 = vadd.f32 %v767, %v780
    %v839 = vadd.f32 %v768, %v780
    %v840 = vadd.f32 %v769, %v780
    %v841 = vadd.f32 %v770, %v780
    %v842 = vadd.f32 %v771, %v780
    %v843 = vadd.f32 %v772, %v780
    %v844 = vadd.f32 %v773, %v780
    %v845 = vadd.f32 %v774, %v780
    %vm846 = vcmask 195584
    %847 = vst.msk [vmem:[#allocation11] sm:$0xff] %vm846, %v782
    %848 = vst.msk [vmem:[#allocation11 + $0x8] sm:$0xff] %vm846, %v783
    %849 = vst.msk [vmem:[#allocation11 + $0x10] sm:$0xff] %vm846, %v784
    %850 = vst.msk [vmem:[#allocation11 + $0x18] sm:$0xff] %vm846, %v785
    %851 = vst.msk [vmem:[#allocation11 + $0x20] sm:$0xff] %vm846, %v786
    %852 = vst.msk [vmem:[#allocation11 + $0x28] sm:$0xff] %vm846, %v787
    %853 = vst.msk [vmem:[#allocation11 + $0x30] sm:$0xff] %vm846, %v788
    %854 = vst.msk [vmem:[#allocation11 + $0x38] sm:$0xff] %vm846, %v789
    %855 = vst.msk [vmem:[#allocation11 + $0x40] sm:$0xff] %vm846, %v790
    %856 = vst.msk [vmem:[#allocation11 + $0x48] sm:$0xff] %vm846, %v791
    %857 = vst.msk [vmem:[#allocation11 + $0x50] sm:$0xff] %vm846, %v792
    %858 = vst.msk [vmem:[#allocation11 + $0x58] sm:$0xff] %vm846, %v793
    %859 = vst.msk [vmem:[#allocation11 + $0x60] sm:$0xff] %vm846, %v794
    %860 = vst.msk [vmem:[#allocation11 + $0x68] sm:$0xff] %vm846, %v795
    %861 = vst.msk [vmem:[#allocation11 + $0x70] sm:$0xff] %vm846, %v796
    %862 = vst.msk [vmem:[#allocation11 + $0x78] sm:$0xff] %vm846, %v797
    %863 = vst.msk [vmem:[#allocation11 + $0x80] sm:$0xff] %vm846, %v798
    %864 = vst.msk [vmem:[#allocation11 + $0x88] sm:$0xff] %vm846, %v799
    %865 = vst.msk [vmem:[#allocation11 + $0x90] sm:$0xff] %vm846, %v800
    %866 = vst.msk [vmem:[#allocation11 + $0x98] sm:$0xff] %vm846, %v801
    %867 = vst.msk [vmem:[#allocation11 + $0xa0] sm:$0xff] %vm846, %v802
    %868 = vst.msk [vmem:[#allocation11 + $0xa8] sm:$0xff] %vm846, %v803
    %869 = vst.msk [vmem:[#allocation11 + $0xb0] sm:$0xff] %vm846, %v804
    %870 = vst.msk [vmem:[#allocation11 + $0xb8] sm:$0xff] %vm846, %v805
    %871 = vst.msk [vmem:[#allocation11 + $0xc0] sm:$0xff] %vm846, %v806
    %872 = vst.msk [vmem:[#allocation11 + $0xc8] sm:$0xff] %vm846, %v807
    %873 = vst.msk [vmem:[#allocation11 + $0xd0] sm:$0xff] %vm846, %v808
    %874 = vst.msk [vmem:[#allocation11 + $0xd8] sm:$0xff] %vm846, %v809
    %875 = vst.msk [vmem:[#allocation11 + $0xe0] sm:$0xff] %vm846, %v810
    %876 = vst.msk [vmem:[#allocation11 + $0xe8] sm:$0xff] %vm846, %v811
    %877 = vst.msk [vmem:[#allocation11 + $0xf0] sm:$0xff] %vm846, %v812
    %878 = vst.msk [vmem:[#allocation11 + $0xf8] sm:$0xff] %vm846, %v813
    %879 = vst.msk [vmem:[#allocation11 + $0x100] sm:$0xff] %vm846, %v814
    %880 = vst.msk [vmem:[#allocation11 + $0x108] sm:$0xff] %vm846, %v815
    %881 = vst.msk [vmem:[#allocation11 + $0x110] sm:$0xff] %vm846, %v816
    %882 = vst.msk [vmem:[#allocation11 + $0x118] sm:$0xff] %vm846, %v817
    %883 = vst.msk [vmem:[#allocation11 + $0x120] sm:$0xff] %vm846, %v818
    %884 = vst.msk [vmem:[#allocation11 + $0x128] sm:$0xff] %vm846, %v819
    %885 = vst.msk [vmem:[#allocation11 + $0x130] sm:$0xff] %vm846, %v820
    %886 = vst.msk [vmem:[#allocation11 + $0x138] sm:$0xff] %vm846, %v821
    %887 = vst.msk [vmem:[#allocation11 + $0x140] sm:$0xff] %vm846, %v822
    %888 = vst.msk [vmem:[#allocation11 + $0x148] sm:$0xff] %vm846, %v823
    %889 = vst.msk [vmem:[#allocation11 + $0x150] sm:$0xff] %vm846, %v824
    %890 = vst.msk [vmem:[#allocation11 + $0x158] sm:$0xff] %vm846, %v825
    %891 = vst.msk [vmem:[#allocation11 + $0x160] sm:$0xff] %vm846, %v826
    %892 = vst.msk [vmem:[#allocation11 + $0x168] sm:$0xff] %vm846, %v827
    %893 = vst.msk [vmem:[#allocation11 + $0x170] sm:$0xff] %vm846, %v828
    %894 = vst.msk [vmem:[#allocation11 + $0x178] sm:$0xff] %vm846, %v829
    %895 = vst.msk [vmem:[#allocation11 + $0x180] sm:$0xff] %vm846, %v830
    %896 = vst.msk [vmem:[#allocation11 + $0x188] sm:$0xff] %vm846, %v831
    %897 = vst.msk [vmem:[#allocation11 + $0x190] sm:$0xff] %vm846, %v832
    %898 = vst.msk [vmem:[#allocation11 + $0x198] sm:$0xff] %vm846, %v833
    %899 = vst.msk [vmem:[#allocation11 + $0x1a0] sm:$0xff] %vm846, %v834
    %900 = vst.msk [vmem:[#allocation11 + $0x1a8] sm:$0xff] %vm846, %v835
    %901 = vst.msk [vmem:[#allocation11 + $0x1b0] sm:$0xff] %vm846, %v836
    %902 = vst.msk [vmem:[#allocation11 + $0x1b8] sm:$0xff] %vm846, %v837
    %903 = vst.msk [vmem:[#allocation11 + $0x1c0] sm:$0xff] %vm846, %v838
    %904 = vst.msk [vmem:[#allocation11 + $0x1c8] sm:$0xff] %vm846, %v839
    %905 = vst.msk [vmem:[#allocation11 + $0x1d0] sm:$0xff] %vm846, %v840
    %906 = vst.msk [vmem:[#allocation11 + $0x1d8] sm:$0xff] %vm846, %v841
    %907 = vst.msk [vmem:[#allocation11 + $0x1e0] sm:$0xff] %vm846, %v842
    %908 = vst.msk [vmem:[#allocation11 + $0x1e8] sm:$0xff] %vm846, %v843
    %909 = vst.msk [vmem:[#allocation11 + $0x1f0] sm:$0xff] %vm846, %v844
    %910 = vst.msk [vmem:[#allocation11 + $0x1f8] sm:$0xff] %vm846, %v845
    // Predicated region
    $region42: #{tpu_custom_call.1} parent=1 // pred_check
      _
    $region43: #{tpu_custom_call.1} parent=1 // pred_check_branch
      %912 = sbr.rel (0) target = $region45
    $region44: #{tpu_custom_call.1} parent=1 // pred_region
      %s914 = ssub.s32 8192, 8192
      %915 = vsyncadd [#allocation4], %s914
      %s916 = sshll.u32 [#allocation11], 4
      %s917 = int_to_ptr.vmem [resolvable:$true] %s916
      %922 = dma.vmem_to_hbm [thread:$0]  %s917, 8192, %s5, [#allocation4], 128, 128, 8
    $region45: #{tpu_custom_call.1} parent=1 // pred_fallthru
      _
    // Predicated region
    $region46: #{tpu_custom_call.1} parent=1 // pred_check
      _
    $region47: #{tpu_custom_call.1} parent=1 // pred_check_branch
      %924 = sbr.rel (0) target = $region49
    $region48: #{tpu_custom_call.1} parent=1 // pred_region
      %925 = dma.done [#allocation4], 8192
    $region49: #{tpu_custom_call.1} parent=1 // pred_fallthru
      _
    %926 = vsyncpa [#allocation3], 1
    %927 = vsyncpa [#allocation6], 1
    %928 = vsyncpa [#allocation9], 1
    %929 = vsyncpa [#allocation4], 1

</llo_original>
